<compile_context>
chip_gen: v5e
topology: v5e:2x2
jax: 0.10.0
libtpu: 0.0.40
codegen_flags: <defaults>
</compile_context>

<pallas_src>
import functools

import jax
import jax.numpy as jnp
from jax.experimental import pallas as pl
from jax.experimental.pallas import tpu as pltpu

HIDDEN_1 = 512
HIDDEN_2 = 256


def _round_up(x: int, m: int) -> int:
    return ((x + m - 1) // m) * m


def policy_kernel(x_ref, w1_ref, b1_ref, w2_ref, b2_ref, w3_ref, b3_ref, o_ref):
    """Fused MLP tile: relu(x@W1+b1) -> relu(.@W2+b2) -> tanh(.@W3+b3).

    Weights are bf16; accumulation, bias add, ReLU and tanh are f32.  x arrives
    as f32 and is cast to bf16 in-kernel.  Output tile is lane-dense (128 cols).
    """
    x = x_ref[...].astype(jnp.bfloat16)  # (tb, n_in) f32 -> bf16 in-kernel

    h1 = jnp.maximum(
        jnp.dot(x, w1_ref[...], preferred_element_type=jnp.float32) + b1_ref[...],
        0.0,
    ).astype(jnp.bfloat16)  # relu + cast fused: one bf16 materialization

    h2 = jnp.maximum(
        jnp.dot(h1, w2_ref[...], preferred_element_type=jnp.float32) + b2_ref[...],
        0.0,
    ).astype(jnp.bfloat16)

    out = jnp.dot(h2, w3_ref[...], preferred_element_type=jnp.float32) + b3_ref[...]
    o_ref[...] = jnp.tanh(out)  # (tb, 128) unmasked lane-dense store


def prepare_params(params):
    """One-time parameter prep.

    bf16 weights, f32 (1, H) biases; W3/b3 zero-padded to a multiple of 128
    output columns so the kernel's output store is lane-dense.
    """
    w1, b1, w2, b2, w3, b3 = params
    n_out = w3.shape[1]
    n_out_pad = _round_up(max(n_out, 128), 128)
    pad = n_out_pad - n_out

    w3p = jnp.pad(jnp.asarray(w3, jnp.float32), ((0, 0), (0, pad)))
    b3p = jnp.pad(jnp.asarray(b3, jnp.float32).reshape(1, -1), ((0, 0), (0, pad)))
    return (
        jnp.asarray(w1, jnp.bfloat16),
        jnp.asarray(b1, jnp.float32).reshape(1, -1),
        jnp.asarray(w2, jnp.bfloat16),
        jnp.asarray(b2, jnp.float32).reshape(1, -1),
        w3p.astype(jnp.bfloat16),
        b3p,
    )


@functools.partial(jax.jit, static_argnames=("n_outputs", "tile_b"))
def policy_forward(x, prepared, *, n_outputs, tile_b=512):
    """x: (B, n_inputs) float32.  Returns (B, n_outputs) float32."""
    w1, b1, w2, b2, w3, b3 = prepared
    n_inputs = w1.shape[0]
    n_out_pad = w3.shape[1]  # lane-dense (multiple of 128)
    B = x.shape[0]

    # Batch tile: multiple of 16 (bf16 sublane packing).  For B <= tile_b the
    # block equals the full batch (always layout-legal, no raggedness); for
    # larger B the ragged last tile is bound-handled by Pallas.
    tile_b = _round_up(max(tile_b, 16), 16)
    tb = B if B <= tile_b else tile_b
    grid = (pl.cdiv(B, tb),)

    # Constant index_map -> weights/biases DMA'd once, VMEM-resident across tiles.
    const = lambda shape: pl.BlockSpec(shape, lambda i: (0, 0))

    out = pl.pallas_call(
        policy_kernel,
        out_shape=jax.ShapeDtypeStruct((B, n_out_pad), jnp.float32),
        grid=grid,
        in_specs=[
            pl.BlockSpec((tb, n_inputs), lambda i: (i, 0)),   # x tile (f32)
            const((n_inputs, HIDDEN_1)),                      # W1 (bf16)
            const((1, HIDDEN_1)),                             # b1 (f32)
            const((HIDDEN_1, HIDDEN_2)),                      # W2 (bf16)
            const((1, HIDDEN_2)),                             # b2 (f32)
            const((HIDDEN_2, n_out_pad)),                     # W3 padded (bf16)
            const((1, n_out_pad)),                            # b3 padded (f32)
        ],
        out_specs=pl.BlockSpec((tb, n_out_pad), lambda i: (i, 0)),
        compiler_params=pltpu.CompilerParams(
            dimension_semantics=("parallel",),
        ),
    )(x, w1, b1, w2, b2, w3, b3)

    # XLA slice of the padded lanes; essentially free (and fused under jit).
    return out[:, :n_outputs]


def init_policy_params(key, n_inputs, n_outputs):
    """Deterministic init mimicking nn.Linear default (U[-1/sqrt(fan_in), +])."""
    keys = jax.random.split(key, 6)

    def linear(kw, kb, fan_in, fan_out):
        bound = 1.0 / jnp.sqrt(jnp.float32(fan_in))
        w = jax.random.uniform(kw, (fan_in, fan_out), jnp.float32, -bound, bound)
        b = jax.random.uniform(kb, (fan_out,), jnp.float32, -bound, bound)
        return w, b

    w1, b1 = linear(keys[0], keys[1], n_inputs, HIDDEN_1)
    w2, b2 = linear(keys[2], keys[3], HIDDEN_1, HIDDEN_2)
    w3, b3 = linear(keys[4], keys[5], HIDDEN_2, n_outputs)
    return (w1, b1, w2, b2, w3, b3)


def _ref_forward_bf16(x, params):
    """Pure-JAX reference with the same precision chain as the kernel."""
    w1, b1, w2, b2, w3, b3 = params
    xb = x.astype(jnp.bfloat16)
    h1 = jnp.maximum(
        jnp.dot(xb, w1.astype(jnp.bfloat16), preferred_element_type=jnp.float32) + b1,
        0.0,
    ).astype(jnp.bfloat16)
    h2 = jnp.maximum(
        jnp.dot(h1, w2.astype(jnp.bfloat16), preferred_element_type=jnp.float32) + b2,
        0.0,
    ).astype(jnp.bfloat16)
    return jnp.tanh(
        jnp.dot(h2, w3.astype(jnp.bfloat16), preferred_element_type=jnp.float32) + b3
    )


if __name__ == "__main__":
    # BipedalWalker-v3: 24-dim observation, 4-dim action.
    N_INPUTS, N_OUTPUTS, BATCH = 24, 4, 8

    key = jax.random.PRNGKey(0)
    k_params, k_x = jax.random.split(key)
    params = init_policy_params(k_params, N_INPUTS, N_OUTPUTS)
    prepared = prepare_params(params)  # one-time: bf16 weights, padded W3/b3
    x = jax.random.normal(k_x, (BATCH, N_INPUTS), jnp.float32)

    out = policy_forward(x, prepared, n_outputs=N_OUTPUTS)
    out = jax.block_until_ready(out)
    assert out.shape == (BATCH, N_OUTPUTS)

    # Check against a pure-JAX reference using the same bf16/f32 precision chain.
    ref_bf16 = _ref_forward_bf16(x, params)
    assert jnp.allclose(out, ref_bf16, atol=2e-3, rtol=1e-3)

    # Sanity vs. the full-f32 PyTorch-equivalent forward (bf16 weights => ~1e-2 dev).
    w1, b1, w2, b2, w3, b3 = params
    ref_f32 = jnp.tanh(
        jnp.maximum(jnp.maximum(x @ w1 + b1, 0.0) @ w2 + b2, 0.0) @ w3 + b3
    )
    assert jnp.allclose(out, ref_f32, atol=5e-2, rtol=5e-2)

    print("KERNEL_OK")
</pallas_src>

<mosaic_0001>
module attributes {stable_mosaic.version = 11 : i64} {
  func.func @policy_kernel(%arg0: i32, %arg1: memref<8x24xf32, #tpu.memory_space<vmem>>, %arg2: memref<24x512xbf16, #tpu.memory_space<vmem>>, %arg3: memref<1x512xf32, #tpu.memory_space<vmem>>, %arg4: memref<512x256xbf16, #tpu.memory_space<vmem>>, %arg5: memref<1x256xf32, #tpu.memory_space<vmem>>, %arg6: memref<256x128xbf16, #tpu.memory_space<vmem>>, %arg7: memref<1x128xf32, #tpu.memory_space<vmem>>, %arg8: memref<8x128xf32, #tpu.memory_space<vmem>>) attributes {dimension_semantics = [#tpu.dimension_semantics<parallel>], iteration_bounds = array<i64: 1>, scalar_prefetch = 0 : i64, scratch_operands = 0 : i64, tpu.core_type = #tpu.core_type<tc>, window_params = [{transform_indices = @transform_0, window_bounds = array<i64: 8, 24>}, {pipeline_mode = #tpu.pipeline_mode<synchronous>, transform_indices = @transform_1, window_bounds = array<i64: 24, 512>}, {pipeline_mode = #tpu.pipeline_mode<synchronous>, transform_indices = @transform_2, window_bounds = array<i64: 1, 512>}, {pipeline_mode = #tpu.pipeline_mode<synchronous>, transform_indices = @transform_3, window_bounds = array<i64: 512, 256>}, {pipeline_mode = #tpu.pipeline_mode<synchronous>, transform_indices = @transform_4, window_bounds = array<i64: 1, 256>}, {pipeline_mode = #tpu.pipeline_mode<synchronous>, transform_indices = @transform_5, window_bounds = array<i64: 256, 128>}, {pipeline_mode = #tpu.pipeline_mode<synchronous>, transform_indices = @transform_6, window_bounds = array<i64: 1, 128>}, {transform_indices = @transform_7, window_bounds = array<i64: 8, 128>}]} {
    %c0 = arith.constant 0 : index
    %c0_0 = arith.constant 0 : index
    %0 = vector.load %arg1[%c0, %c0_0] : memref<8x24xf32, #tpu.memory_space<vmem>>, vector<8x24xf32>
    %1 = arith.truncf %0 : vector<8x24xf32> to vector<8x24xbf16>
    %c0_1 = arith.constant 0 : index
    %c0_2 = arith.constant 0 : index
    %2 = vector.load %arg2[%c0_1, %c0_2] : memref<24x512xbf16, #tpu.memory_space<vmem>>, vector<24x512xbf16>
    %cst = arith.constant dense<0.000000e+00> : vector<8x512xf32>
    %3 = tpu.matmul %1, %2, %cst {dimension_numbers = #tpu.dot_dimension_numbers<[1], [0], [0], [1], [0, 0, 1, 1], [], []>} : vector<8x24xbf16>, vector<24x512xbf16>, vector<8x512xf32> -> vector<8x512xf32>
    %c0_3 = arith.constant 0 : index
    %c0_4 = arith.constant 0 : index
    %4 = vector.load %arg3[%c0_3, %c0_4] : memref<1x512xf32, #tpu.memory_space<vmem>>, vector<1x512xf32>
    %5 = vector.broadcast %4 : vector<1x512xf32> to vector<8x512xf32>
    %6 = arith.addf %3, %5 : vector<8x512xf32>
    %cst_5 = arith.constant 0.000000e+00 : f32
    %7 = vector.broadcast %cst_5 : f32 to vector<8x512xf32>
    %8 = arith.maximumf %6, %7 : vector<8x512xf32>
    %9 = arith.truncf %8 : vector<8x512xf32> to vector<8x512xbf16>
    %c0_6 = arith.constant 0 : index
    %c0_7 = arith.constant 0 : index
    %10 = vector.load %arg4[%c0_6, %c0_7] : memref<512x256xbf16, #tpu.memory_space<vmem>>, vector<512x256xbf16>
    %cst_8 = arith.constant dense<0.000000e+00> : vector<8x256xf32>
    %11 = tpu.matmul %9, %10, %cst_8 {dimension_numbers = #tpu.dot_dimension_numbers<[1], [0], [0], [1], [0, 0, 1, 1], [], []>} : vector<8x512xbf16>, vector<512x256xbf16>, vector<8x256xf32> -> vector<8x256xf32>
    %c0_9 = arith.constant 0 : index
    %c0_10 = arith.constant 0 : index
    %12 = vector.load %arg5[%c0_9, %c0_10] : memref<1x256xf32, #tpu.memory_space<vmem>>, vector<1x256xf32>
    %13 = vector.broadcast %12 : vector<1x256xf32> to vector<8x256xf32>
    %14 = arith.addf %11, %13 : vector<8x256xf32>
    %cst_11 = arith.constant 0.000000e+00 : f32
    %15 = vector.broadcast %cst_11 : f32 to vector<8x256xf32>
    %16 = arith.maximumf %14, %15 : vector<8x256xf32>
    %17 = arith.truncf %16 : vector<8x256xf32> to vector<8x256xbf16>
    %c0_12 = arith.constant 0 : index
    %c0_13 = arith.constant 0 : index
    %18 = vector.load %arg6[%c0_12, %c0_13] : memref<256x128xbf16, #tpu.memory_space<vmem>>, vector<256x128xbf16>
    %cst_14 = arith.constant dense<0.000000e+00> : vector<8x128xf32>
    %19 = tpu.matmul %17, %18, %cst_14 {dimension_numbers = #tpu.dot_dimension_numbers<[1], [0], [0], [1], [0, 0, 1, 1], [], []>} : vector<8x256xbf16>, vector<256x128xbf16>, vector<8x128xf32> -> vector<8x128xf32>
    %c0_15 = arith.constant 0 : index
    %c0_16 = arith.constant 0 : index
    %20 = vector.load %arg7[%c0_15, %c0_16] : memref<1x128xf32, #tpu.memory_space<vmem>>, vector<1x128xf32>
    %21 = vector.broadcast %20 : vector<1x128xf32> to vector<8x128xf32>
    %22 = arith.addf %19, %21 : vector<8x128xf32>
    %23 = math.tanh %22 : vector<8x128xf32>
    %c0_17 = arith.constant 0 : index
    %c0_18 = arith.constant 0 : index
    %24 = vector.load %arg8[%c0_17, %c0_18] : memref<8x128xf32, #tpu.memory_space<vmem>>, vector<8x128xf32>
    tpu.vector_store %arg8[%c0_17, %c0_18], %23 {strides = array<i32>} : memref<8x128xf32, #tpu.memory_space<vmem>>, vector<8x128xf32>,
    return
  }
  func.func @transform_0(%arg0: i32) -> (i32, i32) {
    %c0_i32 = arith.constant 0 : i32
    %c0_i32_0 = arith.constant 0 : i32
    return %arg0, %c0_i32 : i32, i32
  }
  func.func @transform_1(%arg0: i32) -> (i32, i32) {
    %c0_i32 = arith.constant 0 : i32
    %c0_i32_0 = arith.constant 0 : i32
    %c0_i32_1 = arith.constant 0 : i32
    return %c0_i32, %c0_i32_0 : i32, i32
  }
  func.func @transform_2(%arg0: i32) -> (i32, i32) {
    %c0_i32 = arith.constant 0 : i32
    %c0_i32_0 = arith.constant 0 : i32
    %c0_i32_1 = arith.constant 0 : i32
    return %c0_i32, %c0_i32_0 : i32, i32
  }
  func.func @transform_3(%arg0: i32) -> (i32, i32) {
    %c0_i32 = arith.constant 0 : i32
    %c0_i32_0 = arith.constant 0 : i32
    %c0_i32_1 = arith.constant 0 : i32
    return %c0_i32, %c0_i32_0 : i32, i32
  }
  func.func @transform_4(%arg0: i32) -> (i32, i32) {
    %c0_i32 = arith.constant 0 : i32
    %c0_i32_0 = arith.constant 0 : i32
    %c0_i32_1 = arith.constant 0 : i32
    return %c0_i32, %c0_i32_0 : i32, i32
  }
  func.func @transform_5(%arg0: i32) -> (i32, i32) {
    %c0_i32 = arith.constant 0 : i32
    %c0_i32_0 = arith.constant 0 : i32
    %c0_i32_1 = arith.constant 0 : i32
    return %c0_i32, %c0_i32_0 : i32, i32
  }
  func.func @transform_6(%arg0: i32) -> (i32, i32) {
    %c0_i32 = arith.constant 0 : i32
    %c0_i32_0 = arith.constant 0 : i32
    %c0_i32_1 = arith.constant 0 : i32
    return %c0_i32, %c0_i32_0 : i32, i32
  }
  func.func @transform_7(%arg0: i32) -> (i32, i32) {
    %c0_i32 = arith.constant 0 : i32
    %c0_i32_0 = arith.constant 0 : i32
    return %arg0, %c0_i32 : i32, i32
  }
}

</mosaic_0001>

<llo_original>
// kernel: policy_forward.1
$region0: #{policy_forward.1}
  #allocation0 [shape = 'u32[]', space=smem, size = 0x4, offset = 0x4, fixed_abs, tag = 'smem constant byte address 0x4 - core index']
  #allocation1 [shape = 'u32[72,128]{1,0:T(1,128)}', space=vmem, size = 0x9000, scoped, tag = 'internal scratch']
  %s0 = inlined_call_operand.hbm [shape: f32[8,24], index: 0, kind: input, shape index: {}]
  %s1 = inlined_call_operand.hbm [shape: bf16[24,512], index: 1, kind: input, shape index: {}]
  %s2 = inlined_call_operand.hbm [shape: f32[1,512], index: 2, kind: input, shape index: {}]
  %s3 = inlined_call_operand.hbm [shape: bf16[512,256], index: 3, kind: input, shape index: {}]
  %s4 = inlined_call_operand.vmem [shape: f32[1,256], index: 4, kind: input, shape index: {}]
  %s5 = inlined_call_operand.hbm [shape: bf16[256,128], index: 5, kind: input, shape index: {}]
  %s6 = inlined_call_operand.vmem [shape: f32[1,128], index: 6, kind: input, shape index: {}]
  %s7 = inlined_call_operand.vmem [shape: f32[8,128], index: 7, kind: output, shape index: {}]
  %s8 = sld [smem:[#allocation0]]
  $region58: #{policy_forward.1} parent=0
    _
  %s10 = ssub.s32 1, %s8
  %s11 = scalar_select 0, %s10, %s8
  $region1: #{policy_forward.1} parent=0
    #allocation2 [shape = 'u8[4096]{0}', space=vmem, size = 0x1000, scoped, tag = 'input window, operand 0, single buffered']
    #allocation3 [shape = 's32[1]{0}', space=sflag, size = 0x4, scoped, tag = 'scoped memory for policy_forward.1']
    #allocation4 [shape = 'u8[24576]{0}', space=vmem, size = 0x6000, scoped, tag = 'input window, operand 1, single buffered']
    #allocation5 [shape = 's32[1]{0}', space=sflag, size = 0x4, scoped, tag = 'scoped memory for policy_forward.1']
    #allocation6 [shape = 'u8[2048]{0}', space=vmem, size = 0x800, scoped, tag = 'input window, operand 2, single buffered']
    #allocation7 [shape = 'u8[262144]{0}', space=vmem, size = 0x40000, scoped, tag = 'input window, operand 3, single buffered']
    #allocation8 [shape = 's32[1]{0}', space=sflag, size = 0x4, scoped, tag = 'scoped memory for policy_forward.1']
    #allocation9 [shape = 'u8[65536]{0}', space=vmem, size = 0x10000, scoped, tag = 'input window, operand 5, single buffered']
    %12 = vsyncpa [#allocation3], 0
    %13 = vsyncpa [#allocation5], 0
    %14 = vsyncpa [#allocation8], 0
    // Predicated region
    $region2: #{policy_forward.1} parent=1 // pred_check
      _
    $region3: #{policy_forward.1} parent=1 // pred_check_branch
      %16 = sbr.rel (0) target = $region5
    $region4: #{policy_forward.1} parent=1 // pred_region
      %18 = vsyncadd [#allocation3], 0
      %s20 = sshll.u32 %s0, 4
      %s21 = int_to_ptr.hbm [resolvable:$true] %s20
      %s22 = sshll.u32 [#allocation2], 4
      %s23 = int_to_ptr.vmem [resolvable:$true] %s22
      %25 = dma.hbm_to_vmem [thread:$0]  %s21, 128, %s23, [#allocation3]
    $region5: #{policy_forward.1} parent=1 // pred_fallthru
      _
    // Predicated region
    $region6: #{policy_forward.1} parent=1 // pred_check
      _
    $region7: #{policy_forward.1} parent=1 // pred_check_branch
      %27 = sbr.rel (0) target = $region9
    $region8: #{policy_forward.1} parent=1 // pred_region
      %29 = vsyncadd [#allocation5], 0
      %s30 = sshll.u32 %s1, 4
      %s31 = int_to_ptr.hbm [resolvable:$true] %s30
      %s32 = sshll.u32 [#allocation4], 4
      %s33 = int_to_ptr.vmem [resolvable:$true] %s32
      %38 = dma.hbm_to_vmem [thread:$0]  %s31, 768, %s33, [#allocation5], 256, 256, 16
    $region9: #{policy_forward.1} parent=1 // pred_fallthru
      _
    // Predicated region
    $region10: #{policy_forward.1} parent=1 // pred_check
      _
    $region11: #{policy_forward.1} parent=1 // pred_check_branch
      %40 = sbr.rel (0) target = $region13
    $region12: #{policy_forward.1} parent=1 // pred_region
      %42 = vsyncadd [#allocation5], 0
      %s44 = sshll.u32 %s2, 4
      %s45 = int_to_ptr.hbm [resolvable:$true] %s44
      %s46 = sshll.u32 [#allocation6], 4
      %s47 = int_to_ptr.vmem [resolvable:$true] %s46
      %49 = dma.hbm_to_vmem [thread:$0]  %s45, 64, %s47, [#allocation5]
    $region13: #{policy_forward.1} parent=1 // pred_fallthru
      _
    // Predicated region
    $region14: #{policy_forward.1} parent=1 // pred_check
      _
    $region15: #{policy_forward.1} parent=1 // pred_check_branch
      %51 = sbr.rel (0) target = $region17
    $region16: #{policy_forward.1} parent=1 // pred_region
      %53 = vsyncadd [#allocation8], 0
      %s54 = sshll.u32 %s3, 4
      %s55 = int_to_ptr.hbm [resolvable:$true] %s54
      %s56 = sshll.u32 [#allocation7], 4
      %s57 = int_to_ptr.vmem [resolvable:$true] %s56
      %62 = dma.hbm_to_vmem [thread:$0]  %s55, 8192, %s57, [#allocation8], 128, 128, 8
    $region17: #{policy_forward.1} parent=1 // pred_fallthru
      _
    // Predicated region
    $region18: #{policy_forward.1} parent=1 // pred_check
      _
    $region19: #{policy_forward.1} parent=1 // pred_check_branch
      %64 = sbr.rel (0) target = $region21
    $region20: #{policy_forward.1} parent=1 // pred_region
      _
    $region21: #{policy_forward.1} parent=1 // pred_fallthru
      _
    // Predicated region
    $region22: #{policy_forward.1} parent=1 // pred_check
      _
    $region23: #{policy_forward.1} parent=1 // pred_check_branch
      %66 = sbr.rel (0) target = $region25
    $region24: #{policy_forward.1} parent=1 // pred_region
      %68 = vsyncadd [#allocation8], 0
      %s69 = sshll.u32 %s5, 4
      %s70 = int_to_ptr.hbm [resolvable:$true] %s69
      %s71 = sshll.u32 [#allocation9], 4
      %s72 = int_to_ptr.vmem [resolvable:$true] %s71
      %77 = dma.hbm_to_vmem [thread:$0]  %s70, 2048, %s72, [#allocation8], 64, 64, 4
    $region25: #{policy_forward.1} parent=1 // pred_fallthru
      _
    // Predicated region
    $region26: #{policy_forward.1} parent=1 // pred_check
      _
    $region27: #{policy_forward.1} parent=1 // pred_check_branch
      %79 = sbr.rel (0) target = $region29
    $region28: #{policy_forward.1} parent=1 // pred_region
      _
    $region29: #{policy_forward.1} parent=1 // pred_fallthru
      _
    // Predicated region
    $region30: #{policy_forward.1} parent=1 // pred_check
      _
    $region31: #{policy_forward.1} parent=1 // pred_check_branch
      %81 = sbr.rel (0) target = $region33
    $region32: #{policy_forward.1} parent=1 // pred_region
      %83 = dma.done [#allocation3], 128
    $region33: #{policy_forward.1} parent=1 // pred_fallthru
      _
    // Predicated region
    $region34: #{policy_forward.1} parent=1 // pred_check
      _
    $region35: #{policy_forward.1} parent=1 // pred_check_branch
      %85 = sbr.rel (0) target = $region37
    $region36: #{policy_forward.1} parent=1 // pred_region
      %87 = dma.done [#allocation5], 768
    $region37: #{policy_forward.1} parent=1 // pred_fallthru
      _
    // Predicated region
    $region38: #{policy_forward.1} parent=1 // pred_check
      _
    $region39: #{policy_forward.1} parent=1 // pred_check_branch
      %89 = sbr.rel (0) target = $region41
    $region40: #{policy_forward.1} parent=1 // pred_region
      %91 = dma.done [#allocation5], 64
    $region41: #{policy_forward.1} parent=1 // pred_fallthru
      _
    // Predicated region
    $region42: #{policy_forward.1} parent=1 // pred_check
      _
    $region43: #{policy_forward.1} parent=1 // pred_check_branch
      %93 = sbr.rel (0) target = $region45
    $region44: #{policy_forward.1} parent=1 // pred_region
      %95 = dma.done [#allocation8], 8192
    $region45: #{policy_forward.1} parent=1 // pred_fallthru
      _
    // Predicated region
    $region46: #{policy_forward.1} parent=1 // pred_check
      _
    $region47: #{policy_forward.1} parent=1 // pred_check_branch
      %97 = sbr.rel (0) target = $region49
    $region48: #{policy_forward.1} parent=1 // pred_region
      %99 = dma.done [#allocation8], 2048
    $region49: #{policy_forward.1} parent=1 // pred_fallthru
      _
    %v101 = vld [vmem:[#allocation2] sm:$0xff]
    %v102 = vpack.c.bf16 %v101, %v101
    %v103 = vld [vmem:[#allocation4] sm:$0xff]
    %v104 = vld [vmem:[#allocation4 + $0x8] sm:$0xff]
    %v105 = vld [vmem:[#allocation4 + $0x10] sm:$0xff]
    %v106 = vld [vmem:[#allocation4 + $0x18] sm:$0xff]
    %v107 = vld [vmem:[#allocation4 + $0x20] sm:$0xff]
    %v108 = vld [vmem:[#allocation4 + $0x28] sm:$0xff]
    %v109 = vld [vmem:[#allocation6] sm:$0xf]
    %v111 = vperm.slane %v109, 0
    %v112 = vperm.slane %v109, 1
    %v113 = vperm.slane %v109, 2
    %v114 = vperm.slane %v109, 3
    %v125 = vunpack.c.l.b16 %v103
    %v126 = vunpack.c.h.b16 %v103
    %v127 = vunpack.c.l.b16 %v104
    %v128 = vunpack.c.h.b16 %v104
    %v129 = vunpack.c.l.b16 %v105
    %v130 = vunpack.c.h.b16 %v105
    %v131 = vunpack.c.l.b16 %v106
    %v132 = vunpack.c.h.b16 %v106
    %v133 = vunpack.c.l.b16 %v107
    %v134 = vunpack.c.h.b16 %v107
    %v135 = vunpack.c.l.b16 %v108
    %v136 = vunpack.c.h.b16 %v108
    %v137 = vpack.c.b16 %v129, %v125
    %v138 = vpack.c.b16 %v130, %v126
    %v139 = vpack.c.b16 %v131, %v127
    %v140 = vpack.c.b16 %v132, %v128
    %v141 = vpack.c.b16 %v133, %v133
    %v142 = vpack.c.b16 %v134, %v134
    %v143 = vpack.c.b16 %v135, %v135
    %v144 = vpack.c.b16 %v136, %v136
    %vm149 = vcmask 195584
    %v151 = vsel %vm149, %v102, 0
    %vm153 = vcmask 1043456
    %v155 = vsel %vm153, %v141, 0
    %v158 = vsel %vm153, %v142, 0
    %v161 = vsel %vm153, %v143, 0
    %v164 = vsel %vm153, %v144, 0
    %166 = vmatpush.bf16.msra.mxu0 0
    %167 = vmatpush.bf16.msra.mxu0 0
    %168 = vmatpush.bf16.msra.mxu0 0
    %169 = vmatpush.bf16.msra.mxu0 0
    %170 = vmatpush.bf16.msra.mxu0 0
    %171 = vmatpush.bf16.msra.mxu0 0
    %172 = vmatpush.bf16.msra.mxu0 %v155
    %173 = vmatpush.bf16.msra.mxu0 %v137
    %174 = vmatmul.bf16.gmra.mxu0 %v151
    %v175 = vpop.f32.mrf.mxu0
    %v176 = vadd.f32 %v111, %v175
    %v177 = vpop.f32.mrf.mxu0
    %178 = vdwg.mxu0
    %179 = vmatpush.bf16.msra.mxu0 0
    %180 = vmatpush.bf16.msra.mxu0 0
    %181 = vmatpush.bf16.msra.mxu0 0
    %182 = vmatpush.bf16.msra.mxu0 0
    %183 = vmatpush.bf16.msra.mxu0 0
    %184 = vmatpush.bf16.msra.mxu0 0
    %185 = vmatpush.bf16.msra.mxu0 %v158
    %186 = vmatpush.bf16.msra.mxu0 %v138
    %187 = vmatmul.bf16.gmra.mxu0 %v151
    %v188 = vpop.f32.mrf.mxu0
    %v189 = vadd.f32 %v112, %v188
    %v190 = vpop.f32.mrf.mxu0
    %191 = vdwg.mxu0
    %192 = vmatpush.bf16.msra.mxu0 0
    %193 = vmatpush.bf16.msra.mxu0 0
    %194 = vmatpush.bf16.msra.mxu0 0
    %195 = vmatpush.bf16.msra.mxu0 0
    %196 = vmatpush.bf16.msra.mxu0 0
    %197 = vmatpush.bf16.msra.mxu0 0
    %198 = vmatpush.bf16.msra.mxu0 %v161
    %199 = vmatpush.bf16.msra.mxu0 %v139
    %200 = vmatmul.bf16.gmra.mxu0 %v151
    %v201 = vpop.f32.mrf.mxu0
    %v202 = vadd.f32 %v113, %v201
    %v203 = vpop.f32.mrf.mxu0
    %204 = vdwg.mxu0
    %205 = vmatpush.bf16.msra.mxu0 0
    %206 = vmatpush.bf16.msra.mxu0 0
    %207 = vmatpush.bf16.msra.mxu0 0
    %208 = vmatpush.bf16.msra.mxu0 0
    %209 = vmatpush.bf16.msra.mxu0 0
    %210 = vmatpush.bf16.msra.mxu0 0
    %211 = vmatpush.bf16.msra.mxu0 %v164
    %212 = vmatpush.bf16.msra.mxu0 %v140
    %213 = vmatmul.bf16.gmra.mxu0 %v151
    %v214 = vpop.f32.mrf.mxu0
    %v215 = vadd.f32 %v114, %v214
    %v216 = vpop.f32.mrf.mxu0
    %217 = vdwg.mxu0
    %v218 = vmax.f32 %v176, 0.0
    %v219 = vmax.f32 %v189, 0.0
    %v220 = vmax.f32 %v202, 0.0
    %v221 = vmax.f32 %v215, 0.0
    %v222 = vpack.c.bf16 %v218, %v218
    %v223 = vpack.c.bf16 %v219, %v219
    %v224 = vpack.c.bf16 %v220, %v220
    %v225 = vpack.c.bf16 %v221, %v221
    %v226 = vld [vmem:[#allocation7] sm:$0xff]
    %v227 = vld [vmem:[#allocation7 + $0x8] sm:$0xff]
    %v228 = vld [vmem:[#allocation7 + $0x10] sm:$0xff]
    %v229 = vld [vmem:[#allocation7 + $0x18] sm:$0xff]
    %v230 = vld [vmem:[#allocation7 + $0x20] sm:$0xff]
    %v231 = vld [vmem:[#allocation7 + $0x28] sm:$0xff]
    %v232 = vld [vmem:[#allocation7 + $0x30] sm:$0xff]
    %v233 = vld [vmem:[#allocation7 + $0x38] sm:$0xff]
    %v234 = vld [vmem:[#allocation7 + $0x40] sm:$0xff]
    %v235 = vld [vmem:[#allocation7 + $0x48] sm:$0xff]
    %v236 = vld [vmem:[#allocation7 + $0x50] sm:$0xff]
    %v237 = vld [vmem:[#allocation7 + $0x58] sm:$0xff]
    %v238 = vld [vmem:[#allocation7 + $0x60] sm:$0xff]
    %v239 = vld [vmem:[#allocation7 + $0x68] sm:$0xff]
    %v240 = vld [vmem:[#allocation7 + $0x70] sm:$0xff]
    %v241 = vld [vmem:[#allocation7 + $0x78] sm:$0xff]
    %v242 = vld [vmem:[#allocation7 + $0x80] sm:$0xff]
    %v243 = vld [vmem:[#allocation7 + $0x88] sm:$0xff]
    %v244 = vld [vmem:[#allocation7 + $0x90] sm:$0xff]
    %v245 = vld [vmem:[#allocation7 + $0x98] sm:$0xff]
    %v246 = vld [vmem:[#allocation7 + $0xa0] sm:$0xff]
    %v247 = vld [vmem:[#allocation7 + $0xa8] sm:$0xff]
    %v248 = vld [vmem:[#allocation7 + $0xb0] sm:$0xff]
    %v249 = vld [vmem:[#allocation7 + $0xb8] sm:$0xff]
    %v250 = vld [vmem:[#allocation7 + $0xc0] sm:$0xff]
    %v251 = vld [vmem:[#allocation7 + $0xc8] sm:$0xff]
    %v252 = vld [vmem:[#allocation7 + $0xd0] sm:$0xff]
    %v253 = vld [vmem:[#allocation7 + $0xd8] sm:$0xff]
    %v254 = vld [vmem:[#allocation7 + $0xe0] sm:$0xff]
    %v255 = vld [vmem:[#allocation7 + $0xe8] sm:$0xff]
    %v256 = vld [vmem:[#allocation7 + $0xf0] sm:$0xff]
    %v257 = vld [vmem:[#allocation7 + $0xf8] sm:$0xff]
    %v258 = vld [vmem:[#allocation7 + $0x100] sm:$0xff]
    %v259 = vld [vmem:[#allocation7 + $0x108] sm:$0xff]
    %v260 = vld [vmem:[#allocation7 + $0x110] sm:$0xff]
    %v261 = vld [vmem:[#allocation7 + $0x118] sm:$0xff]
    %v262 = vld [vmem:[#allocation7 + $0x120] sm:$0xff]
    %v263 = vld [vmem:[#allocation7 + $0x128] sm:$0xff]
    %v264 = vld [vmem:[#allocation7 + $0x130] sm:$0xff]
    %v265 = vld [vmem:[#allocation7 + $0x138] sm:$0xff]
    %v266 = vld [vmem:[#allocation7 + $0x140] sm:$0xff]
    %v267 = vld [vmem:[#allocation7 + $0x148] sm:$0xff]
    %v268 = vld [vmem:[#allocation7 + $0x150] sm:$0xff]
    %v269 = vld [vmem:[#allocation7 + $0x158] sm:$0xff]
    %v270 = vld [vmem:[#allocation7 + $0x160] sm:$0xff]
    %v271 = vld [vmem:[#allocation7 + $0x168] sm:$0xff]
    %v272 = vld [vmem:[#allocation7 + $0x170] sm:$0xff]
    %v273 = vld [vmem:[#allocation7 + $0x178] sm:$0xff]
    %v274 = vld [vmem:[#allocation7 + $0x180] sm:$0xff]
    %v275 = vld [vmem:[#allocation7 + $0x188] sm:$0xff]
    %v276 = vld [vmem:[#allocation7 + $0x190] sm:$0xff]
    %v277 = vld [vmem:[#allocation7 + $0x198] sm:$0xff]
    %v278 = vld [vmem:[#allocation7 + $0x1a0] sm:$0xff]
    %v279 = vld [vmem:[#allocation7 + $0x1a8] sm:$0xff]
    %v280 = vld [vmem:[#allocation7 + $0x1b0] sm:$0xff]
    %v281 = vld [vmem:[#allocation7 + $0x1b8] sm:$0xff]
    %v282 = vld [vmem:[#allocation7 + $0x1c0] sm:$0xff]
    %v283 = vld [vmem:[#allocation7 + $0x1c8] sm:$0xff]
    %v284 = vld [vmem:[#allocation7 + $0x1d0] sm:$0xff]
    %v285 = vld [vmem:[#allocation7 + $0x1d8] sm:$0xff]
    %v286 = vld [vmem:[#allocation7 + $0x1e0] sm:$0xff]
    %v287 = vld [vmem:[#allocation7 + $0x1e8] sm:$0xff]
    %v288 = vld [vmem:[#allocation7 + $0x1f0] sm:$0xff]
    %v289 = vld [vmem:[#allocation7 + $0x1f8] sm:$0xff]
    %v290 = vld [vmem:[%s4] sm:$0x3]
    %v292 = vperm.slane %v290, 0
    %v293 = vperm.slane %v290, 1
    %v360 = vunpack.c.l.b16 %v226
    %v361 = vunpack.c.h.b16 %v226
    %v362 = vunpack.c.l.b16 %v227
    %v363 = vunpack.c.h.b16 %v227
    %v364 = vunpack.c.l.b16 %v228
    %v365 = vunpack.c.h.b16 %v228
    %v366 = vunpack.c.l.b16 %v229
    %v367 = vunpack.c.h.b16 %v229
    %v368 = vunpack.c.l.b16 %v230
    %v369 = vunpack.c.h.b16 %v230
    %v370 = vunpack.c.l.b16 %v231
    %v371 = vunpack.c.h.b16 %v231
    %v372 = vunpack.c.l.b16 %v232
    %v373 = vunpack.c.h.b16 %v232
    %v374 = vunpack.c.l.b16 %v233
    %v375 = vunpack.c.h.b16 %v233
    %v376 = vunpack.c.l.b16 %v234
    %v377 = vunpack.c.h.b16 %v234
    %v378 = vunpack.c.l.b16 %v235
    %v379 = vunpack.c.h.b16 %v235
    %v380 = vunpack.c.l.b16 %v236
    %v381 = vunpack.c.h.b16 %v236
    %v382 = vunpack.c.l.b16 %v237
    %v383 = vunpack.c.h.b16 %v237
    %v384 = vunpack.c.l.b16 %v238
    %v385 = vunpack.c.h.b16 %v238
    %v386 = vunpack.c.l.b16 %v239
    %v387 = vunpack.c.h.b16 %v239
    %v388 = vunpack.c.l.b16 %v240
    %v389 = vunpack.c.h.b16 %v240
    %v390 = vunpack.c.l.b16 %v241
    %v391 = vunpack.c.h.b16 %v241
    %v392 = vunpack.c.l.b16 %v242
    %v393 = vunpack.c.h.b16 %v242
    %v394 = vunpack.c.l.b16 %v243
    %v395 = vunpack.c.h.b16 %v243
    %v396 = vunpack.c.l.b16 %v244
    %v397 = vunpack.c.h.b16 %v244
    %v398 = vunpack.c.l.b16 %v245
    %v399 = vunpack.c.h.b16 %v245
    %v400 = vunpack.c.l.b16 %v246
    %v401 = vunpack.c.h.b16 %v246
    %v402 = vunpack.c.l.b16 %v247
    %v403 = vunpack.c.h.b16 %v247
    %v404 = vunpack.c.l.b16 %v248
    %v405 = vunpack.c.h.b16 %v248
    %v406 = vunpack.c.l.b16 %v249
    %v407 = vunpack.c.h.b16 %v249
    %v408 = vunpack.c.l.b16 %v250
    %v409 = vunpack.c.h.b16 %v250
    %v410 = vunpack.c.l.b16 %v251
    %v411 = vunpack.c.h.b16 %v251
    %v412 = vunpack.c.l.b16 %v252
    %v413 = vunpack.c.h.b16 %v252
    %v414 = vunpack.c.l.b16 %v253
    %v415 = vunpack.c.h.b16 %v253
    %v416 = vunpack.c.l.b16 %v254
    %v417 = vunpack.c.h.b16 %v254
    %v418 = vunpack.c.l.b16 %v255
    %v419 = vunpack.c.h.b16 %v255
    %v420 = vunpack.c.l.b16 %v256
    %v421 = vunpack.c.h.b16 %v256
    %v422 = vunpack.c.l.b16 %v257
    %v423 = vunpack.c.h.b16 %v257
    %v424 = vunpack.c.l.b16 %v258
    %v425 = vunpack.c.h.b16 %v258
    %v426 = vunpack.c.l.b16 %v259
    %v427 = vunpack.c.h.b16 %v259
    %v428 = vunpack.c.l.b16 %v260
    %v429 = vunpack.c.h.b16 %v260
    %v430 = vunpack.c.l.b16 %v261
    %v431 = vunpack.c.h.b16 %v261
    %v432 = vunpack.c.l.b16 %v262
    %v433 = vunpack.c.h.b16 %v262
    %v434 = vunpack.c.l.b16 %v263
    %v435 = vunpack.c.h.b16 %v263
    %v436 = vunpack.c.l.b16 %v264
    %v437 = vunpack.c.h.b16 %v264
    %v438 = vunpack.c.l.b16 %v265
    %v439 = vunpack.c.h.b16 %v265
    %v440 = vunpack.c.l.b16 %v266
    %v441 = vunpack.c.h.b16 %v266
    %v442 = vunpack.c.l.b16 %v267
    %v443 = vunpack.c.h.b16 %v267
    %v444 = vunpack.c.l.b16 %v268
    %v445 = vunpack.c.h.b16 %v268
    %v446 = vunpack.c.l.b16 %v269
    %v447 = vunpack.c.h.b16 %v269
    %v448 = vunpack.c.l.b16 %v270
    %v449 = vunpack.c.h.b16 %v270
    %v450 = vunpack.c.l.b16 %v271
    %v451 = vunpack.c.h.b16 %v271
    %v452 = vunpack.c.l.b16 %v272
    %v453 = vunpack.c.h.b16 %v272
    %v454 = vunpack.c.l.b16 %v273
    %v455 = vunpack.c.h.b16 %v273
    %v456 = vunpack.c.l.b16 %v274
    %v457 = vunpack.c.h.b16 %v274
    %v458 = vunpack.c.l.b16 %v275
    %v459 = vunpack.c.h.b16 %v275
    %v460 = vunpack.c.l.b16 %v276
    %v461 = vunpack.c.h.b16 %v276
    %v462 = vunpack.c.l.b16 %v277
    %v463 = vunpack.c.h.b16 %v277
    %v464 = vunpack.c.l.b16 %v278
    %v465 = vunpack.c.h.b16 %v278
    %v466 = vunpack.c.l.b16 %v279
    %v467 = vunpack.c.h.b16 %v279
    %v468 = vunpack.c.l.b16 %v280
    %v469 = vunpack.c.h.b16 %v280
    %v470 = vunpack.c.l.b16 %v281
    %v471 = vunpack.c.h.b16 %v281
    %v472 = vunpack.c.l.b16 %v282
    %v473 = vunpack.c.h.b16 %v282
    %v474 = vunpack.c.l.b16 %v283
    %v475 = vunpack.c.h.b16 %v283
    %v476 = vunpack.c.l.b16 %v284
    %v477 = vunpack.c.h.b16 %v284
    %v478 = vunpack.c.l.b16 %v285
    %v479 = vunpack.c.h.b16 %v285
    %v480 = vunpack.c.l.b16 %v286
    %v481 = vunpack.c.h.b16 %v286
    %v482 = vunpack.c.l.b16 %v287
    %v483 = vunpack.c.h.b16 %v287
    %v484 = vunpack.c.l.b16 %v288
    %v485 = vunpack.c.h.b16 %v288
    %v486 = vunpack.c.l.b16 %v289
    %v487 = vunpack.c.h.b16 %v289
    %v488 = vpack.c.b16 %v362, %v360
    %v489 = vpack.c.b16 %v363, %v361
    %v490 = vpack.c.b16 %v366, %v364
    %v491 = vpack.c.b16 %v367, %v365
    %v492 = vpack.c.b16 %v370, %v368
    %v493 = vpack.c.b16 %v371, %v369
    %v494 = vpack.c.b16 %v374, %v372
    %v495 = vpack.c.b16 %v375, %v373
    %v496 = vpack.c.b16 %v378, %v376
    %v497 = vpack.c.b16 %v379, %v377
    %v498 = vpack.c.b16 %v382, %v380
    %v499 = vpack.c.b16 %v383, %v381
    %v500 = vpack.c.b16 %v386, %v384
    %v501 = vpack.c.b16 %v387, %v385
    %v502 = vpack.c.b16 %v390, %v388
    %v503 = vpack.c.b16 %v391, %v389
    %v504 = vpack.c.b16 %v394, %v392
    %v505 = vpack.c.b16 %v395, %v393
    %v506 = vpack.c.b16 %v398, %v396
    %v507 = vpack.c.b16 %v399, %v397
    %v508 = vpack.c.b16 %v402, %v400
    %v509 = vpack.c.b16 %v403, %v401
    %v510 = vpack.c.b16 %v406, %v404
    %v511 = vpack.c.b16 %v407, %v405
    %v512 = vpack.c.b16 %v410, %v408
    %v513 = vpack.c.b16 %v411, %v409
    %v514 = vpack.c.b16 %v414, %v412
    %v515 = vpack.c.b16 %v415, %v413
    %v516 = vpack.c.b16 %v418, %v416
    %v517 = vpack.c.b16 %v419, %v417
    %v518 = vpack.c.b16 %v422, %v420
    %v519 = vpack.c.b16 %v423, %v421
    %v520 = vpack.c.b16 %v426, %v424
    %v521 = vpack.c.b16 %v427, %v425
    %v522 = vpack.c.b16 %v430, %v428
    %v523 = vpack.c.b16 %v431, %v429
    %v524 = vpack.c.b16 %v434, %v432
    %v525 = vpack.c.b16 %v435, %v433
    %v526 = vpack.c.b16 %v438, %v436
    %v527 = vpack.c.b16 %v439, %v437
    %v528 = vpack.c.b16 %v442, %v440
    %v529 = vpack.c.b16 %v443, %v441
    %v530 = vpack.c.b16 %v446, %v444
    %v531 = vpack.c.b16 %v447, %v445
    %v532 = vpack.c.b16 %v450, %v448
    %v533 = vpack.c.b16 %v451, %v449
    %v534 = vpack.c.b16 %v454, %v452
    %v535 = vpack.c.b16 %v455, %v453
    %v536 = vpack.c.b16 %v458, %v456
    %v537 = vpack.c.b16 %v459, %v457
    %v538 = vpack.c.b16 %v462, %v460
    %v539 = vpack.c.b16 %v463, %v461
    %v540 = vpack.c.b16 %v466, %v464
    %v541 = vpack.c.b16 %v467, %v465
    %v542 = vpack.c.b16 %v470, %v468
    %v543 = vpack.c.b16 %v471, %v469
    %v544 = vpack.c.b16 %v474, %v472
    %v545 = vpack.c.b16 %v475, %v473
    %v546 = vpack.c.b16 %v478, %v476
    %v547 = vpack.c.b16 %v479, %v477
    %v548 = vpack.c.b16 %v482, %v480
    %v549 = vpack.c.b16 %v483, %v481
    %v550 = vpack.c.b16 %v486, %v484
    %v551 = vpack.c.b16 %v487, %v485
    %616 = vmatpush.bf16.msra.mxu0 %v502
    %617 = vmatpush.bf16.msra.mxu0 %v500
    %618 = vmatpush.bf16.msra.mxu0 %v498
    %619 = vmatpush.bf16.msra.mxu0 %v496
    %620 = vmatpush.bf16.msra.mxu0 %v494
    %621 = vmatpush.bf16.msra.mxu0 %v492
    %622 = vmatpush.bf16.msra.mxu0 %v490
    %623 = vmatpush.bf16.msra.mxu0 %v488
    %624 = vmatmul.bf16.gmra.mxu0 %v222
    %v625 = vpop.f32.mrf.mxu0
    %v626 = vadd.f32 %v292, %v625
    %v627 = vpop.f32.mrf.mxu0
    %628 = vdwg.mxu0
    %629 = vmatpush.bf16.msra.mxu0 %v518
    %630 = vmatpush.bf16.msra.mxu0 %v516
    %631 = vmatpush.bf16.msra.mxu0 %v514
    %632 = vmatpush.bf16.msra.mxu0 %v512
    %633 = vmatpush.bf16.msra.mxu0 %v510
    %634 = vmatpush.bf16.msra.mxu0 %v508
    %635 = vmatpush.bf16.msra.mxu0 %v506
    %636 = vmatpush.bf16.msra.mxu0 %v504
    %637 = vmatmul.bf16.gmra.mxu0 %v223
    %v638 = vpop.f32.mrf.mxu0
    %v639 = vadd.f32 %v626, %v638
    %v640 = vpop.f32.mrf.mxu0
    %641 = vdwg.mxu0
    %642 = vmatpush.bf16.msra.mxu0 %v534
    %643 = vmatpush.bf16.msra.mxu0 %v532
    %644 = vmatpush.bf16.msra.mxu0 %v530
    %645 = vmatpush.bf16.msra.mxu0 %v528
    %646 = vmatpush.bf16.msra.mxu0 %v526
    %647 = vmatpush.bf16.msra.mxu0 %v524
    %648 = vmatpush.bf16.msra.mxu0 %v522
    %649 = vmatpush.bf16.msra.mxu0 %v520
    %650 = vmatmul.bf16.gmra.mxu0 %v224
    %v651 = vpop.f32.mrf.mxu0
    %v652 = vadd.f32 %v639, %v651
    %v653 = vpop.f32.mrf.mxu0
    %654 = vdwg.mxu0
    %655 = vmatpush.bf16.msra.mxu0 %v550
    %656 = vmatpush.bf16.msra.mxu0 %v548
    %657 = vmatpush.bf16.msra.mxu0 %v546
    %658 = vmatpush.bf16.msra.mxu0 %v544
    %659 = vmatpush.bf16.msra.mxu0 %v542
    %660 = vmatpush.bf16.msra.mxu0 %v540
    %661 = vmatpush.bf16.msra.mxu0 %v538
    %662 = vmatpush.bf16.msra.mxu0 %v536
    %663 = vmatmul.bf16.gmra.mxu0 %v225
    %v664 = vpop.f32.mrf.mxu0
    %v665 = vadd.f32 %v652, %v664
    %v666 = vpop.f32.mrf.mxu0
    %667 = vdwg.mxu0
    %668 = vmatpush.bf16.msra.mxu0 %v503
    %669 = vmatpush.bf16.msra.mxu0 %v501
    %670 = vmatpush.bf16.msra.mxu0 %v499
    %671 = vmatpush.bf16.msra.mxu0 %v497
    %672 = vmatpush.bf16.msra.mxu0 %v495
    %673 = vmatpush.bf16.msra.mxu0 %v493
    %674 = vmatpush.bf16.msra.mxu0 %v491
    %675 = vmatpush.bf16.msra.mxu0 %v489
    %676 = vmatmul.bf16.gmra.mxu0 %v222
    %v677 = vpop.f32.mrf.mxu0
    %v678 = vadd.f32 %v293, %v677
    %v679 = vpop.f32.mrf.mxu0
    %680 = vdwg.mxu0
    %681 = vmatpush.bf16.msra.mxu0 %v519
    %682 = vmatpush.bf16.msra.mxu0 %v517
    %683 = vmatpush.bf16.msra.mxu0 %v515
    %684 = vmatpush.bf16.msra.mxu0 %v513
    %685 = vmatpush.bf16.msra.mxu0 %v511
    %686 = vmatpush.bf16.msra.mxu0 %v509
    %687 = vmatpush.bf16.msra.mxu0 %v507
    %688 = vmatpush.bf16.msra.mxu0 %v505
    %689 = vmatmul.bf16.gmra.mxu0 %v223
    %v690 = vpop.f32.mrf.mxu0
    %v691 = vadd.f32 %v678, %v690
    %v692 = vpop.f32.mrf.mxu0
    %693 = vdwg.mxu0
    %694 = vmatpush.bf16.msra.mxu0 %v535
    %695 = vmatpush.bf16.msra.mxu0 %v533
    %696 = vmatpush.bf16.msra.mxu0 %v531
    %697 = vmatpush.bf16.msra.mxu0 %v529
    %698 = vmatpush.bf16.msra.mxu0 %v527
    %699 = vmatpush.bf16.msra.mxu0 %v525
    %700 = vmatpush.bf16.msra.mxu0 %v523
    %701 = vmatpush.bf16.msra.mxu0 %v521
    %702 = vmatmul.bf16.gmra.mxu0 %v224
    %v703 = vpop.f32.mrf.mxu0
    %v704 = vadd.f32 %v691, %v703
    %v705 = vpop.f32.mrf.mxu0
    %706 = vdwg.mxu0
    %707 = vmatpush.bf16.msra.mxu0 %v551
    %708 = vmatpush.bf16.msra.mxu0 %v549
    %709 = vmatpush.bf16.msra.mxu0 %v547
    %710 = vmatpush.bf16.msra.mxu0 %v545
    %711 = vmatpush.bf16.msra.mxu0 %v543
    %712 = vmatpush.bf16.msra.mxu0 %v541
    %713 = vmatpush.bf16.msra.mxu0 %v539
    %714 = vmatpush.bf16.msra.mxu0 %v537
    %715 = vmatmul.bf16.gmra.mxu0 %v225
    %v716 = vpop.f32.mrf.mxu0
    %v717 = vadd.f32 %v704, %v716
    %v718 = vpop.f32.mrf.mxu0
    %719 = vdwg.mxu0
    %v720 = vmax.f32 %v665, 0.0
    %v721 = vmax.f32 %v717, 0.0
    %v722 = vpack.c.bf16 %v720, %v720
    %v723 = vpack.c.bf16 %v721, %v721
    %v724 = vld [vmem:[#allocation9] sm:$0xf]
    %v725 = vld [vmem:[#allocation9 + $0x4] sm:$0xf]
    %v726 = vld [vmem:[#allocation9 + $0x8] sm:$0xf]
    %v727 = vld [vmem:[#allocation9 + $0xc] sm:$0xf]
    %v728 = vld [vmem:[#allocation9 + $0x10] sm:$0xf]
    %v729 = vld [vmem:[#allocation9 + $0x14] sm:$0xf]
    %v730 = vld [vmem:[#allocation9 + $0x18] sm:$0xf]
    %v731 = vld [vmem:[#allocation9 + $0x1c] sm:$0xf]
    %v732 = vld [vmem:[#allocation9 + $0x20] sm:$0xf]
    %v733 = vld [vmem:[#allocation9 + $0x24] sm:$0xf]
    %v734 = vld [vmem:[#allocation9 + $0x28] sm:$0xf]
    %v735 = vld [vmem:[#allocation9 + $0x2c] sm:$0xf]
    %v736 = vld [vmem:[#allocation9 + $0x30] sm:$0xf]
    %v737 = vld [vmem:[#allocation9 + $0x34] sm:$0xf]
    %v738 = vld [vmem:[#allocation9 + $0x38] sm:$0xf]
    %v739 = vld [vmem:[#allocation9 + $0x3c] sm:$0xf]
    %v740 = vld [vmem:[#allocation9 + $0x40] sm:$0xf]
    %v741 = vld [vmem:[#allocation9 + $0x44] sm:$0xf]
    %v742 = vld [vmem:[#allocation9 + $0x48] sm:$0xf]
    %v743 = vld [vmem:[#allocation9 + $0x4c] sm:$0xf]
    %v744 = vld [vmem:[#allocation9 + $0x50] sm:$0xf]
    %v745 = vld [vmem:[#allocation9 + $0x54] sm:$0xf]
    %v746 = vld [vmem:[#allocation9 + $0x58] sm:$0xf]
    %v747 = vld [vmem:[#allocation9 + $0x5c] sm:$0xf]
    %v748 = vld [vmem:[#allocation9 + $0x60] sm:$0xf]
    %v749 = vld [vmem:[#allocation9 + $0x64] sm:$0xf]
    %v750 = vld [vmem:[#allocation9 + $0x68] sm:$0xf]
    %v751 = vld [vmem:[#allocation9 + $0x6c] sm:$0xf]
    %v752 = vld [vmem:[#allocation9 + $0x70] sm:$0xf]
    %v753 = vld [vmem:[#allocation9 + $0x74] sm:$0xf]
    %v754 = vld [vmem:[#allocation9 + $0x78] sm:$0xf]
    %v755 = vld [vmem:[#allocation9 + $0x7c] sm:$0xf]
    %v756 = vld [vmem:[%s6] sm:$0x1]
    %v758 = vperm.slane %v756, 0
    %v792 = vunpack.c.l.b16 %v724
    %v793 = vunpack.c.l.b16 %v725
    %v794 = vunpack.c.l.b16 %v726
    %v795 = vunpack.c.l.b16 %v727
    %v796 = vunpack.c.l.b16 %v728
    %v797 = vunpack.c.l.b16 %v729
    %v798 = vunpack.c.l.b16 %v730
    %v799 = vunpack.c.l.b16 %v731
    %v800 = vunpack.c.l.b16 %v732
    %v801 = vunpack.c.l.b16 %v733
    %v802 = vunpack.c.l.b16 %v734
    %v803 = vunpack.c.l.b16 %v735
    %v804 = vunpack.c.l.b16 %v736
    %v805 = vunpack.c.l.b16 %v737
    %v806 = vunpack.c.l.b16 %v738
    %v807 = vunpack.c.l.b16 %v739
    %v808 = vunpack.c.l.b16 %v740
    %v809 = vunpack.c.l.b16 %v741
    %v810 = vunpack.c.l.b16 %v742
    %v811 = vunpack.c.l.b16 %v743
    %v812 = vunpack.c.l.b16 %v744
    %v813 = vunpack.c.l.b16 %v745
    %v814 = vunpack.c.l.b16 %v746
    %v815 = vunpack.c.l.b16 %v747
    %v816 = vunpack.c.l.b16 %v748
    %v817 = vunpack.c.l.b16 %v749
    %v818 = vunpack.c.l.b16 %v750
    %v819 = vunpack.c.l.b16 %v751
    %v820 = vunpack.c.l.b16 %v752
    %v821 = vunpack.c.l.b16 %v753
    %v822 = vunpack.c.l.b16 %v754
    %v823 = vunpack.c.l.b16 %v755
    %v824 = vpack.c.b16 %v793, %v792
    %v825 = vpack.c.b16 %v795, %v794
    %v826 = vpack.c.b16 %v797, %v796
    %v827 = vpack.c.b16 %v799, %v798
    %v828 = vpack.c.b16 %v801, %v800
    %v829 = vpack.c.b16 %v803, %v802
    %v830 = vpack.c.b16 %v805, %v804
    %v831 = vpack.c.b16 %v807, %v806
    %v832 = vpack.c.b16 %v809, %v808
    %v833 = vpack.c.b16 %v811, %v810
    %v834 = vpack.c.b16 %v813, %v812
    %v835 = vpack.c.b16 %v815, %v814
    %v836 = vpack.c.b16 %v817, %v816
    %v837 = vpack.c.b16 %v819, %v818
    %v838 = vpack.c.b16 %v821, %v820
    %v839 = vpack.c.b16 %v823, %v822
    %856 = vmatpush.bf16.msra.mxu0 %v831
    %857 = vmatpush.bf16.msra.mxu0 %v830
    %858 = vmatpush.bf16.msra.mxu0 %v829
    %859 = vmatpush.bf16.msra.mxu0 %v828
    %860 = vmatpush.bf16.msra.mxu0 %v827
    %861 = vmatpush.bf16.msra.mxu0 %v826
    %862 = vmatpush.bf16.msra.mxu0 %v825
    %863 = vmatpush.bf16.msra.mxu0 %v824
    %864 = vmatmul.bf16.gmra.mxu0 %v722
    %v865 = vpop.f32.mrf.mxu0
    %v866 = vadd.f32 %v758, %v865
    %v867 = vpop.f32.mrf.mxu0
    %868 = vdwg.mxu0
    %869 = vmatpush.bf16.msra.mxu0 %v839
    %870 = vmatpush.bf16.msra.mxu0 %v838
    %871 = vmatpush.bf16.msra.mxu0 %v837
    %872 = vmatpush.bf16.msra.mxu0 %v836
    %873 = vmatpush.bf16.msra.mxu0 %v835
    %874 = vmatpush.bf16.msra.mxu0 %v834
    %875 = vmatpush.bf16.msra.mxu0 %v833
    %876 = vmatpush.bf16.msra.mxu0 %v832
    %877 = vmatmul.bf16.gmra.mxu0 %v723
    %v878 = vpop.f32.mrf.mxu0
    %v879 = vadd.f32 %v866, %v878
    %v880 = vpop.f32.mrf.mxu0
    %881 = vdwg.mxu0
    %v882 = vtanh.pop %v879
    %883 = vst [vmem:[%s7] sm:$0xff] %v882
    // Predicated region
    $region50: #{policy_forward.1} parent=1 // pred_check
      _
    $region51: #{policy_forward.1} parent=1 // pred_check_branch
      %885 = sbr.rel (0) target = $region53
    $region52: #{policy_forward.1} parent=1 // pred_region
      _
    $region53: #{policy_forward.1} parent=1 // pred_fallthru
      _
    // Predicated region
    $region54: #{policy_forward.1} parent=1 // pred_check
      _
    $region55: #{policy_forward.1} parent=1 // pred_check_branch
      %887 = sbr.rel (0) target = $region57
    $region56: #{policy_forward.1} parent=1 // pred_region
      _
    $region57: #{policy_forward.1} parent=1 // pred_fallthru
      _
    %888 = vsyncpa [#allocation3], 1
    %889 = vsyncpa [#allocation5], 1
    %890 = vsyncpa [#allocation8], 1

</llo_original>
